<compile_context>
chip_gen: v5e
topology: v5e:2x2
jax: 0.10.0
libtpu: 0.0.40
codegen_flags: <defaults>
</compile_context>

<pallas_src>
import math
from functools import partial

import jax
import jax.numpy as jnp
from jax import lax
from jax.experimental import pallas as pl
from jax.experimental.pallas import tpu as pltpu


# ----------------------------- in-kernel helpers -----------------------------

def _ln(x, g, b, eps):
    mu = jnp.mean(x, axis=-1, keepdims=True)
    var = jnp.mean(jnp.square(x - mu), axis=-1, keepdims=True)
    return (x - mu) * lax.rsqrt(var + eps) * g + b


# ------------------------- fused depth-loop kernel ----------------------------

def _fused_blocks_kernel(patches_ref, pw_ref, pb_ref, gsa_ref,
                         ln_g_ref, ln_b_ref, w12_ref, b12_ref, w3_ref, b3_ref,
                         o_ref, *, hidden, eps):
    """grid = (row_tiles, depth).  o_ref (same block across the depth axis)
    carries the VMEM-resident activation from one block to the next."""
    d = pl.program_id(1)

    # Patch embedding folded into the first depth step (no standalone launch).
    @pl.when(d == 0)
    def _():
        o_ref[...] = (jnp.dot(patches_ref[...], pw_ref[...],
                              preferred_element_type=jnp.float32)
                      + pb_ref[...])

    x = o_ref[...]                      # block input == skip_1, VMEM resident
    # GSA(sin) is input/batch independent -> precomputed in XLA; broadcast add.
    x2 = x + gsa_ref[...]

    # LayerNorm (single nn.LayerNorm instance reused inside the torch block).
    normed = _ln(x2, ln_g_ref[...], ln_b_ref[...], eps)

    # SwiGLU with w1 || w2 merged into one (D, 2H) MXU push; lane-aligned split.
    h = (jnp.dot(normed, w12_ref[...], preferred_element_type=jnp.float32)
         + b12_ref[...])
    a = h[:, :hidden]
    g = h[:, hidden:]
    ff = (jnp.dot(a * jax.nn.sigmoid(a) * g, w3_ref[...],
                  preferred_element_type=jnp.float32)
          + b3_ref[...])

    # Residual; next depth step reads this block back from VMEM.
    o_ref[...] = ff + x2


def fused_blocks(patches_flat, gsa_tiled, params, *, eps=1e-5):
    M, P = patches_flat.shape
    depth, _, D = gsa_tiled.shape
    hidden = params["w3"].shape[1]
    H2 = 2 * hidden

    # Row-tile the (B*L) axis so it can be marked "parallel" (feeds both
    # TensorCores on v7x); the depth axis is a sequential carry ("arbitrary").
    row_tile = M // 2 if (M % 16 == 0) else M
    grid = (M // row_tile, depth)

    return pl.pallas_call(
        partial(_fused_blocks_kernel, hidden=hidden, eps=eps),
        out_shape=jax.ShapeDtypeStruct((M, D), jnp.float32),
        grid_spec=pltpu.PrefetchScalarGridSpec(
            num_scalar_prefetch=0,
            grid=grid,
            in_specs=[
                pl.BlockSpec((row_tile, P), lambda r, d: (r, 0)),        # patches
                pl.BlockSpec((P, D),        lambda r, d: (0, 0)),        # patch_w
                pl.BlockSpec((1, D),        lambda r, d: (0, 0)),        # patch_b
                pl.BlockSpec((None, row_tile, D), lambda r, d: (d, r, 0)),  # gsa
                pl.BlockSpec((None, 1, D),       lambda r, d: (d, 0, 0)),   # ln_g
                pl.BlockSpec((None, 1, D),       lambda r, d: (d, 0, 0)),   # ln_b
                pl.BlockSpec((None, D, H2),      lambda r, d: (d, 0, 0)),   # w12
                pl.BlockSpec((None, 1, H2),      lambda r, d: (d, 0, 0)),   # b12
                pl.BlockSpec((None, hidden, D),  lambda r, d: (d, 0, 0)),   # w3
                pl.BlockSpec((None, 1, D),       lambda r, d: (d, 0, 0)),   # b3
            ],
            out_specs=pl.BlockSpec((row_tile, D), lambda r, d: (r, 0)),
        ),
        compiler_params=pltpu.CompilerParams(
            dimension_semantics=("parallel", "arbitrary")),
    )(patches_flat, params["patch_w"], params["patch_b"].reshape(1, D),
      gsa_tiled, params["ln_g"], params["ln_b"],
      params["w12"], params["b12"], params["w3"], params["b3"])


# ------------------------------ JAX glue --------------------------------------

def patchify(img, p):
    """einops: 'b c (h p1) (w p2) -> b (h w) (p1 p2 c)'"""
    B, C, H, W = img.shape
    h, w = H // p, W // p
    x = img.reshape(B, C, h, p, w, p)
    x = x.transpose(0, 2, 4, 3, 5, 1)                  # b h w p1 p2 c
    return x.reshape(B, h * w, p * p * C)


def axial_rotary_sin(L, dim, max_freq=10):
    """AxialRotaryEmbedding.forward -> the `sin` output, shape (L, dim).
    Constant in (L, dim): computed once, constant-folded by XLA under jit."""
    n = int(math.sqrt(L))
    scales = jnp.linspace(1.0, max_freq / 2.0, dim // 4, dtype=jnp.float32)
    seq = jnp.linspace(-1.0, 1.0, n, dtype=jnp.float32)[:, None]        # (n, 1)
    seq = seq * scales[None, :] * jnp.pi                                 # (n, d/4)
    x_sinu = jnp.broadcast_to(seq[:, None, :], (n, n, dim // 4))         # i d -> i j d
    y_sinu = jnp.broadcast_to(seq[None, :, :], (n, n, dim // 4))         # j d -> i j d
    sin = jnp.concatenate([jnp.sin(x_sinu), jnp.sin(y_sinu)], axis=-1)   # (n,n,d/2)
    sin = sin.reshape(n * n, dim // 2)
    return jnp.repeat(sin, 2, axis=-1)          # 'n d -> n (d j)', j=2  -> (L, dim)


def gsa_on_sin(sin2d, params):
    """GSA applied to the (constant) rotary sin table, batched over depth.
    Input/batch independent -> hoisted out of the Pallas kernel.
    TODO(synk): GSA is an external (zeta) module with no definition provided;
    implemented as single-head self-attention with qkv + output projections."""
    D = sin2d.shape[-1]
    scale = D ** -0.5
    q = jnp.einsum('ld,zdk->zlk', sin2d, params["wq"]) + params["bq"][:, None, :]
    k = jnp.einsum('ld,zdk->zlk', sin2d, params["wk"]) + params["bk"][:, None, :]
    v = jnp.einsum('ld,zdk->zlk', sin2d, params["wv"]) + params["bv"][:, None, :]
    p = jax.nn.softmax(jnp.einsum('zqd,zkd->zqk', q, k) * scale, axis=-1)
    out = jnp.einsum('zqk,zkd->zqd', p, v)
    return jnp.einsum('zqd,zdo->zqo', out, params["wo"]) + params["bo"][:, None, :]


# --------------------------- Model forward -------------------------------------

@partial(jax.jit, static_argnames=("patch_size",))
def vision_llama_forward(img, params, *, patch_size):
    patches = patchify(img, patch_size)                     # (B, N, patch_dim)
    B, N, P = patches.shape
    D = params["patch_w"].shape[1]

    # Constants / input-independent precompute (plain JAX, once per forward).
    sin2d = axial_rotary_sin(N, D)                          # (N, D)
    gsa = gsa_on_sin(sin2d, params)                         # (depth, N, D)
    gsa_tiled = jnp.tile(gsa, (1, B, 1))                    # (depth, B*N, D)

    # Patch embedding + all pyramid blocks in ONE fused pallas_call.
    # (emb dropout == identity at inference; cls_token unused in the forward.)
    x = fused_blocks(patches.reshape(B * N, P), gsa_tiled, params)

    # Output head in plain JAX (tiny; XLA fuses it):
    # mean over seq -> LayerNorm -> AdaptiveAvgPool1d(dim) (== identity) -> Linear
    x = jnp.mean(x.reshape(B, N, D), axis=1)                # (B, D)
    mu = jnp.mean(x, axis=-1, keepdims=True)
    var = jnp.mean(jnp.square(x - mu), axis=-1, keepdims=True)
    x = (x - mu) * lax.rsqrt(var + 1e-5) * params["head_ln_g"] + params["head_ln_b"]
    return x @ params["head_w"] + params["head_b"]


# ------------------------------ Parameters -------------------------------------

def init_params(key, *, dim, depth, channels, patch_size, mlp_mult, num_classes):
    patch_dim = channels * patch_size * patch_size
    hidden = dim * mlp_mult

    def lin(k, i, o):
        k1, k2 = jax.random.split(k)
        w = jax.random.normal(k1, (i, o), jnp.float32) * 0.02
        bias = jax.random.normal(k2, (o,), jnp.float32) * 0.01
        return w, bias

    keys = jax.random.split(key, 2 + depth)
    patch_w, patch_b = lin(keys[0], patch_dim, dim)
    head_w, head_b = lin(keys[1], dim, num_classes)

    per_block = []
    for d in range(depth):
        bk = jax.random.split(keys[2 + d], 5)
        w1, b1 = lin(bk[0], dim, hidden)
        w2, b2 = lin(bk[1], dim, hidden)
        w3, b3 = lin(bk[2], hidden, dim)
        wqkv, bqkv = lin(bk[3], dim, 3 * dim)
        wo, bo = lin(bk[4], dim, dim)
        per_block.append(dict(
            ln_g=jnp.ones((1, dim), jnp.float32),
            ln_b=jnp.zeros((1, dim), jnp.float32),
            # SwiGLU: w1 || w2 merged for a single MXU push.
            w12=jnp.concatenate([w1, w2], axis=1),
            b12=jnp.concatenate([b1, b2]).reshape(1, 2 * hidden),
            w3=w3, b3=b3.reshape(1, dim),
            wq=wqkv[:, :dim],        bq=bqkv[:dim],
            wk=wqkv[:, dim:2 * dim], bk=bqkv[dim:2 * dim],
            wv=wqkv[:, 2 * dim:],    bv=bqkv[2 * dim:],
            wo=wo, bo=bo,
        ))

    # Stack every per-block tensor along a leading depth axis so the fused
    # kernel can stream block d's weights with a depth-indexed BlockSpec.
    stacked = {k: jnp.stack([blk[k] for blk in per_block])
               for k in per_block[0]}

    return dict(
        patch_w=patch_w, patch_b=patch_b,
        head_ln_g=jnp.ones((dim,), jnp.float32),
        head_ln_b=jnp.zeros((dim,), jnp.float32),
        head_w=head_w, head_b=head_b,
        **stacked,
    )


# --------------------------------- Main ------------------------------------------

if __name__ == "__main__":
    B, C, IMG, PATCH = 2, 4, 16, 4          # -> 16 patches of dim 4*4*4 = 64
    DIM, DEPTH, MLP_MULT, NUM_CLASSES = 32, 2, 4, 64

    key = jax.random.PRNGKey(0)
    k_img, k_par = jax.random.split(key)
    img = jax.random.normal(k_img, (B, C, IMG, IMG), jnp.float32)
    params = init_params(k_par, dim=DIM, depth=DEPTH, channels=C,
                         patch_size=PATCH, mlp_mult=MLP_MULT,
                         num_classes=NUM_CLASSES)

    out = vision_llama_forward(img, params, patch_size=PATCH)
    out = jax.block_until_ready(out)
    assert out.shape == (B, NUM_CLASSES), out.shape
    assert bool(jnp.all(jnp.isfinite(out)))
    print("KERNEL_OK")
</pallas_src>

<mosaic_0001>
module attributes {stable_mosaic.version = 11 : i64} {
  func.func @_fused_blocks_kernel(%arg0: i32, %arg1: i32, %arg2: memref<16x64xf32, #tpu.memory_space<vmem>>, %arg3: memref<64x32xf32, #tpu.memory_space<vmem>>, %arg4: memref<1x32xf32, #tpu.memory_space<vmem>>, %arg5: memref<1x16x32xf32, #tpu.memory_space<vmem>>, %arg6: memref<1x1x32xf32, #tpu.memory_space<vmem>>, %arg7: memref<1x1x32xf32, #tpu.memory_space<vmem>>, %arg8: memref<1x32x256xf32, #tpu.memory_space<vmem>>, %arg9: memref<1x1x256xf32, #tpu.memory_space<vmem>>, %arg10: memref<1x128x32xf32, #tpu.memory_space<vmem>>, %arg11: memref<1x1x32xf32, #tpu.memory_space<vmem>>, %arg12: memref<16x32xf32, #tpu.memory_space<vmem>>) attributes {dimension_semantics = [#tpu.dimension_semantics<parallel>, #tpu.dimension_semantics<arbitrary>], iteration_bounds = array<i64: 2, 2>, scalar_prefetch = 0 : i64, scratch_operands = 0 : i64, tpu.core_type = #tpu.core_type<tc>, window_params = [{transform_indices = @transform_0, window_bounds = array<i64: 16, 64>}, {pipeline_mode = #tpu.pipeline_mode<synchronous>, transform_indices = @transform_1, window_bounds = array<i64: 64, 32>}, {pipeline_mode = #tpu.pipeline_mode<synchronous>, transform_indices = @transform_2, window_bounds = array<i64: 1, 32>}, {transform_indices = @transform_3, window_bounds = array<i64: 1, 16, 32>}, {transform_indices = @transform_4, window_bounds = array<i64: 1, 1, 32>}, {transform_indices = @transform_5, window_bounds = array<i64: 1, 1, 32>}, {transform_indices = @transform_6, window_bounds = array<i64: 1, 32, 256>}, {transform_indices = @transform_7, window_bounds = array<i64: 1, 1, 256>}, {transform_indices = @transform_8, window_bounds = array<i64: 1, 128, 32>}, {transform_indices = @transform_9, window_bounds = array<i64: 1, 1, 32>}, {transform_indices = @transform_10, window_bounds = array<i64: 16, 32>}]} {
    %c0_i32 = arith.constant 0 : i32
    %0 = arith.cmpi eq, %arg1, %c0_i32 : i32
    %1 = arith.extui %0 : i1 to i32
    %c0_i32_0 = arith.constant 0 : i32
    %2 = arith.cmpi ne, %1, %c0_i32_0 : i32
    scf.if %2 {
      %c0_32 = arith.constant 0 : index
      %c0_33 = arith.constant 0 : index
      %58 = vector.load %arg2[%c0_32, %c0_33] : memref<16x64xf32, #tpu.memory_space<vmem>>, vector<16x64xf32>
      %c0_34 = arith.constant 0 : index
      %c0_35 = arith.constant 0 : index
      %59 = vector.load %arg3[%c0_34, %c0_35] : memref<64x32xf32, #tpu.memory_space<vmem>>, vector<64x32xf32>
      %cst_36 = arith.constant dense<0.000000e+00> : vector<16x32xf32>
      %60 = tpu.matmul %58, %59, %cst_36 {dimension_numbers = #tpu.dot_dimension_numbers<[1], [0], [0], [1], [0, 0, 1, 1], [], []>} : vector<16x64xf32>, vector<64x32xf32>, vector<16x32xf32> -> vector<16x32xf32>
      %c0_37 = arith.constant 0 : index
      %c0_38 = arith.constant 0 : index
      %61 = vector.load %arg4[%c0_37, %c0_38] : memref<1x32xf32, #tpu.memory_space<vmem>>, vector<1x32xf32>
      %62 = vector.broadcast %61 : vector<1x32xf32> to vector<16x32xf32>
      %63 = arith.addf %60, %62 : vector<16x32xf32>
      %c0_39 = arith.constant 0 : index
      %c0_40 = arith.constant 0 : index
      %64 = vector.load %arg12[%c0_39, %c0_40] : memref<16x32xf32, #tpu.memory_space<vmem>>, vector<16x32xf32>
      tpu.vector_store %arg12[%c0_39, %c0_40], %63 {strides = array<i32>} : memref<16x32xf32, #tpu.memory_space<vmem>>, vector<16x32xf32>,
    } else {
    }
    %c0 = arith.constant 0 : index
    %c0_1 = arith.constant 0 : index
    %3 = vector.load %arg12[%c0, %c0_1] : memref<16x32xf32, #tpu.memory_space<vmem>>, vector<16x32xf32>
    %c0_2 = arith.constant 0 : index
    %c0_3 = arith.constant 0 : index
    %c0_4 = arith.constant 0 : index
    %4 = vector.load %arg5[%c0_2, %c0_3, %c0_4] : memref<1x16x32xf32, #tpu.memory_space<vmem>>, vector<1x16x32xf32>
    %5 = vector.shape_cast %4 : vector<1x16x32xf32> to vector<16x32xf32>
    %6 = arith.addf %3, %5 : vector<16x32xf32>
    %c0_5 = arith.constant 0 : index
    %c0_6 = arith.constant 0 : index
    %c0_7 = arith.constant 0 : index
    %7 = vector.load %arg6[%c0_5, %c0_6, %c0_7] : memref<1x1x32xf32, #tpu.memory_space<vmem>>, vector<1x1x32xf32>
    %8 = vector.shape_cast %7 : vector<1x1x32xf32> to vector<1x32xf32>
    %c0_8 = arith.constant 0 : index
    %c0_9 = arith.constant 0 : index
    %c0_10 = arith.constant 0 : index
    %9 = vector.load %arg7[%c0_8, %c0_9, %c0_10] : memref<1x1x32xf32, #tpu.memory_space<vmem>>, vector<1x1x32xf32>
    %10 = vector.shape_cast %9 : vector<1x1x32xf32> to vector<1x32xf32>
    %cst = arith.constant dense<0.000000e+00> : vector<16xf32>
    %11 = vector.multi_reduction <add>, %6, %cst [1] : vector<16x32xf32> to vector<16xf32>
    %12 = vector.shape_cast %11 : vector<16xf32> to vector<16x1xf32>
    %cst_11 = arith.constant 3.200000e+01 : f32
    %13 = vector.broadcast %cst_11 : f32 to vector<16x1xf32>
    %14 = arith.divf %12, %13 : vector<16x1xf32>
    %15 = vector.broadcast %14 : vector<16x1xf32> to vector<16x32xf32>
    %16 = arith.subf %6, %15 : vector<16x32xf32>
    %17 = arith.mulf %16, %16 : vector<16x32xf32>
    %cst_12 = arith.constant dense<0.000000e+00> : vector<16xf32>
    %18 = vector.multi_reduction <add>, %17, %cst_12 [1] : vector<16x32xf32> to vector<16xf32>
    %19 = vector.shape_cast %18 : vector<16xf32> to vector<16x1xf32>
    %cst_13 = arith.constant 3.200000e+01 : f32
    %20 = vector.broadcast %cst_13 : f32 to vector<16x1xf32>
    %21 = arith.divf %19, %20 : vector<16x1xf32>
    %22 = vector.broadcast %14 : vector<16x1xf32> to vector<16x32xf32>
    %23 = arith.subf %6, %22 : vector<16x32xf32>
    %cst_14 = arith.constant 9.99999974E-6 : f32
    %24 = vector.broadcast %cst_14 : f32 to vector<16x1xf32>
    %25 = arith.addf %21, %24 : vector<16x1xf32>
    %26 = math.rsqrt %25 : vector<16x1xf32>
    %27 = vector.broadcast %26 : vector<16x1xf32> to vector<16x32xf32>
    %28 = arith.mulf %23, %27 : vector<16x32xf32>
    %29 = vector.broadcast %8 : vector<1x32xf32> to vector<16x32xf32>
    %30 = arith.mulf %28, %29 : vector<16x32xf32>
    %31 = vector.broadcast %10 : vector<1x32xf32> to vector<16x32xf32>
    %32 = arith.addf %30, %31 : vector<16x32xf32>
    %c0_15 = arith.constant 0 : index
    %c0_16 = arith.constant 0 : index
    %c0_17 = arith.constant 0 : index
    %33 = vector.load %arg8[%c0_15, %c0_16, %c0_17] : memref<1x32x256xf32, #tpu.memory_space<vmem>>, vector<1x32x256xf32>
    %34 = vector.shape_cast %33 : vector<1x32x256xf32> to vector<32x256xf32>
    %cst_18 = arith.constant dense<0.000000e+00> : vector<16x256xf32>
    %35 = tpu.matmul %32, %34, %cst_18 {dimension_numbers = #tpu.dot_dimension_numbers<[1], [0], [0], [1], [0, 0, 1, 1], [], []>} : vector<16x32xf32>, vector<32x256xf32>, vector<16x256xf32> -> vector<16x256xf32>
    %c0_19 = arith.constant 0 : index
    %c0_20 = arith.constant 0 : index
    %c0_21 = arith.constant 0 : index
    %36 = vector.load %arg9[%c0_19, %c0_20, %c0_21] : memref<1x1x256xf32, #tpu.memory_space<vmem>>, vector<1x1x256xf32>
    %37 = vector.shape_cast %36 : vector<1x1x256xf32> to vector<1x256xf32>
    %38 = vector.broadcast %37 : vector<1x256xf32> to vector<16x256xf32>
    %39 = arith.addf %35, %38 : vector<16x256xf32>
    %40 = vector.extract_strided_slice %39 {offsets = [0, 0], sizes = [16, 128], strides = [1, 1]} : vector<16x256xf32> to vector<16x128xf32>
    %41 = vector.extract_strided_slice %39 {offsets = [0, 128], sizes = [16, 128], strides = [1, 1]} : vector<16x256xf32> to vector<16x128xf32>
    %42 = arith.negf %40 : vector<16x128xf32>
    %43 = math.exp %42 : vector<16x128xf32>
    %cst_22 = arith.constant 1.000000e+00 : f32
    %44 = vector.broadcast %cst_22 : f32 to vector<16x128xf32>
    %45 = arith.addf %44, %43 : vector<16x128xf32>
    %46 = arith.divf %44, %45 : vector<16x128xf32>
    %47 = arith.mulf %40, %46 : vector<16x128xf32>
    %48 = arith.mulf %47, %41 : vector<16x128xf32>
    %c0_23 = arith.constant 0 : index
    %c0_24 = arith.constant 0 : index
    %c0_25 = arith.constant 0 : index
    %49 = vector.load %arg10[%c0_23, %c0_24, %c0_25] : memref<1x128x32xf32, #tpu.memory_space<vmem>>, vector<1x128x32xf32>
    %50 = vector.shape_cast %49 : vector<1x128x32xf32> to vector<128x32xf32>
    %cst_26 = arith.constant dense<0.000000e+00> : vector<16x32xf32>
    %51 = tpu.matmul %48, %50, %cst_26 {dimension_numbers = #tpu.dot_dimension_numbers<[1], [0], [0], [1], [0, 0, 1, 1], [], []>} : vector<16x128xf32>, vector<128x32xf32>, vector<16x32xf32> -> vector<16x32xf32>
    %c0_27 = arith.constant 0 : index
    %c0_28 = arith.constant 0 : index
    %c0_29 = arith.constant 0 : index
    %52 = vector.load %arg11[%c0_27, %c0_28, %c0_29] : memref<1x1x32xf32, #tpu.memory_space<vmem>>, vector<1x1x32xf32>
    %53 = vector.shape_cast %52 : vector<1x1x32xf32> to vector<1x32xf32>
    %54 = vector.broadcast %53 : vector<1x32xf32> to vector<16x32xf32>
    %55 = arith.addf %51, %54 : vector<16x32xf32>
    %56 = arith.addf %55, %6 : vector<16x32xf32>
    %c0_30 = arith.constant 0 : index
    %c0_31 = arith.constant 0 : index
    %57 = vector.load %arg12[%c0_30, %c0_31] : memref<16x32xf32, #tpu.memory_space<vmem>>, vector<16x32xf32>
    tpu.vector_store %arg12[%c0_30, %c0_31], %56 {strides = array<i32>} : memref<16x32xf32, #tpu.memory_space<vmem>>, vector<16x32xf32>,
    return
  }
  func.func @transform_0(%arg0: i32, %arg1: i32) -> (i32, i32) {
    %c0_i32 = arith.constant 0 : i32
    %c0_i32_0 = arith.constant 0 : i32
    return %arg0, %c0_i32 : i32, i32
  }
  func.func @transform_1(%arg0: i32, %arg1: i32) -> (i32, i32) {
    %c0_i32 = arith.constant 0 : i32
    %c0_i32_0 = arith.constant 0 : i32
    %c0_i32_1 = arith.constant 0 : i32
    return %c0_i32, %c0_i32_0 : i32, i32
  }
  func.func @transform_2(%arg0: i32, %arg1: i32) -> (i32, i32) {
    %c0_i32 = arith.constant 0 : i32
    %c0_i32_0 = arith.constant 0 : i32
    %c0_i32_1 = arith.constant 0 : i32
    return %c0_i32, %c0_i32_0 : i32, i32
  }
  func.func @transform_3(%arg0: i32, %arg1: i32) -> (i32, i32, i32) {
    %c0_i32 = arith.constant 0 : i32
    %c0_i32_0 = arith.constant 0 : i32
    return %arg1, %arg0, %c0_i32 : i32, i32, i32
  }
  func.func @transform_4(%arg0: i32, %arg1: i32) -> (i32, i32, i32) {
    %c0_i32 = arith.constant 0 : i32
    %c0_i32_0 = arith.constant 0 : i32
    %c0_i32_1 = arith.constant 0 : i32
    return %arg1, %c0_i32, %c0_i32_0 : i32, i32, i32
  }
  func.func @transform_5(%arg0: i32, %arg1: i32) -> (i32, i32, i32) {
    %c0_i32 = arith.constant 0 : i32
    %c0_i32_0 = arith.constant 0 : i32
    %c0_i32_1 = arith.constant 0 : i32
    return %arg1, %c0_i32, %c0_i32_0 : i32, i32, i32
  }
  func.func @transform_6(%arg0: i32, %arg1: i32) -> (i32, i32, i32) {
    %c0_i32 = arith.constant 0 : i32
    %c0_i32_0 = arith.constant 0 : i32
    %c0_i32_1 = arith.constant 0 : i32
    return %arg1, %c0_i32, %c0_i32_0 : i32, i32, i32
  }
  func.func @transform_7(%arg0: i32, %arg1: i32) -> (i32, i32, i32) {
    %c0_i32 = arith.constant 0 : i32
    %c0_i32_0 = arith.constant 0 : i32
    %c0_i32_1 = arith.constant 0 : i32
    return %arg1, %c0_i32, %c0_i32_0 : i32, i32, i32
  }
  func.func @transform_8(%arg0: i32, %arg1: i32) -> (i32, i32, i32) {
    %c0_i32 = arith.constant 0 : i32
    %c0_i32_0 = arith.constant 0 : i32
    %c0_i32_1 = arith.constant 0 : i32
    return %arg1, %c0_i32, %c0_i32_0 : i32, i32, i32
  }
  func.func @transform_9(%arg0: i32, %arg1: i32) -> (i32, i32, i32) {
    %c0_i32 = arith.constant 0 : i32
    %c0_i32_0 = arith.constant 0 : i32
    %c0_i32_1 = arith.constant 0 : i32
    return %arg1, %c0_i32, %c0_i32_0 : i32, i32, i32
  }
  func.func @transform_10(%arg0: i32, %arg1: i32) -> (i32, i32) {
    %c0_i32 = arith.constant 0 : i32
    %c0_i32_0 = arith.constant 0 : i32
    return %arg0, %c0_i32 : i32, i32
  }
}

</mosaic_0001>

<llo_original>
// kernel: vision_llama_forward.1
$region0: #{vision_llama_forward.1}
  #allocation0 [shape = 'u32[]', space=smem, size = 0x4, offset = 0x4, fixed_abs, tag = 'smem constant byte address 0x4 - core index']
  #allocation1 [shape = 'u32[72,128]{1,0:T(1,128)}', space=vmem, size = 0x9000, scoped, tag = 'internal scratch']
  %s0 = inlined_call_operand.vmem [shape: f32[32,64], index: 0, kind: input, shape index: {}]
  %s1 = inlined_call_operand.vmem [shape: f32[64,32], index: 1, kind: input, shape index: {}]
  %s2 = inlined_call_operand.vmem [shape: f32[1,32], index: 2, kind: input, shape index: {}]
  %s3 = inlined_call_operand.vmem [shape: f32[2,32,32], index: 3, kind: input, shape index: {}]
  %s4 = inlined_call_operand.vmem [shape: f32[2,1,32], index: 4, kind: input, shape index: {}]
  %s5 = inlined_call_operand.vmem [shape: f32[2,1,32], index: 5, kind: input, shape index: {}]
  %s6 = inlined_call_operand.vmem [shape: f32[2,32,256], index: 6, kind: input, shape index: {}]
  %s7 = inlined_call_operand.vmem [shape: f32[2,1,256], index: 7, kind: input, shape index: {}]
  %s8 = inlined_call_operand.vmem [shape: f32[2,128,32], index: 8, kind: input, shape index: {}]
  %s9 = inlined_call_operand.vmem [shape: f32[2,1,32], index: 9, kind: input, shape index: {}]
  %s10 = inlined_call_operand.vmem [shape: f32[32,32], index: 10, kind: output, shape index: {}]
  %s11 = sld [smem:[#allocation0]]
  $region77: #{vision_llama_forward.1} parent=0
    _
  %s13 = ssub.s32 1, %s11
  %s14 = scalar_select 0, %s13, %s11
  loop: start=0, step=1, limit=6
  $region2: #{vision_llama_forward.1} parent=0 // loop_pre_header
    _
  $region3: #{vision_llama_forward.1} parent=0 // loop_header
    %s16 = sphi 0, %s20
    %p17 = scmp.ge.s32.totalorder %s16, 6
    %s23 = sphi 0, %s35
    %s24 = sphi 0, %s31
    %s25 = sphi 0, %s23
    %s26 = sphi 0, %s24
    %s27 = sphi 0, %s25
    %s28 = sphi 0, %s26
    %s38 = sphi 0, %s40
    %s41 = sphi 0, %s38
    %s42 = sphi 0, %s41
    %s58 = sphi 0, %s42
    %s62 = sphi 0, %s62
    %s64 = sphi 0, %s62
    %s65 = sphi 0, %s64
    %s79 = sphi 0, %s65
    %s83 = sphi 0, %s83
    %s85 = sphi 0, %s83
    %s86 = sphi 0, %s85
    %s100 = sphi 0, %s86
    %s108 = sphi 0, %s110
    %s111 = sphi 0, %s108
    %s112 = sphi 0, %s111
    %s128 = sphi 0, %s112
    %s134 = sphi 0, %s136
    %s137 = sphi 0, %s134
    %s138 = sphi 0, %s137
    %s154 = sphi 0, %s138
    %s160 = sphi 0, %s162
    %s163 = sphi 0, %s160
    %s164 = sphi 0, %s163
    %s180 = sphi 0, %s164
    %s186 = sphi 0, %s188
    %s189 = sphi 0, %s186
    %s190 = sphi 0, %s189
    %s206 = sphi 0, %s190
    %s212 = sphi 0, %s214
    %s215 = sphi 0, %s212
    %s216 = sphi 0, %s215
    %s232 = sphi 0, %s216
    %s238 = sphi 0, %s240
    %s241 = sphi 0, %s238
    %s242 = sphi 0, %s241
    %s258 = sphi 0, %s242
    %s264 = sphi 0, %s266
    %s267 = sphi 0, %s264
    %s268 = sphi 0, %s267
    %s284 = sphi 0, %s268
    %s290 = sphi 0, %s292
    %s293 = sphi 0, %s290
    %s294 = sphi 0, %s293
    %s310 = sphi 0, %s294
  $region4: #{vision_llama_forward.1} parent=0 // loop_header_branch
    %19 = sbr.rel (%p17) target = $region8
  $region5: #{vision_llama_forward.1} parent=0 // loop_body
    %s21 = ssub.s32 %s16, 1
    %s22 = ssub.s32 %s16, 2
    %s29 = sadd.s32 1, %s24
    %p30 = scmp.ge.s32.totalorder %s29, 2
    %s31 = scalar_select %p30, 0, %s29
    %s32 = sadd.s32 1, %s23
    %s33 = scalar_select %p30, %s32, %s23
    %p34 = scmp.ge.s32.totalorder %s33, 2
    %s35 = scalar_select %p34, 0, %s33
    %s36 = ssub.s32 %s23, %s35
    %p37 = scmp.eq.s32.totalorder %s36, 0
    %s39 = sadd.s32 %s38, 1
    %s40 = scalar_select %p37, %s38, %s39
    %p43 = pneg %p37
    %p44 = scmp.eq.s32.totalorder %s16, 3
    %p45 = por %p43, %p44
    %p46 = scmp.ne.s32.totalorder %s38, %s41
    %p47 = scmp.eq.s32.totalorder %s16, 0
    %p48 = por %p46, %p47
    %p49 = scmp.ne.s32.totalorder %s38, %s41
    %p50 = scmp.eq.s32.totalorder %s21, 3
    %p51 = por %p49, %p50
    %p52 = scmp.ne.s32.totalorder %s41, %s42
    %p53 = scmp.eq.s32.totalorder %s21, 0
    %p54 = por %p52, %p53
    %p55 = scmp.ne.s32.totalorder %s41, %s42
    %p56 = scmp.eq.s32.totalorder %s22, 3
    %p57 = por %p55, %p56
    %p59 = scmp.ne.s32.totalorder %s42, %s58
    %p60 = scmp.eq.s32.totalorder %s22, 0
    %p61 = por %p59, %p60
    %s63 = sadd.s32 %s62, 1
    %p66 = scmp.eq.s32.totalorder %s16, 3
    %p67 = scmp.ne.s32.totalorder %s62, %s64
    %p68 = scmp.eq.s32.totalorder %s16, 0
    %p69 = por %p67, %p68
    %p70 = scmp.ne.s32.totalorder %s62, %s64
    %p71 = scmp.eq.s32.totalorder %s21, 3
    %p72 = por %p70, %p71
    %p73 = scmp.ne.s32.totalorder %s64, %s65
    %p74 = scmp.eq.s32.totalorder %s21, 0
    %p75 = por %p73, %p74
    %p76 = scmp.ne.s32.totalorder %s64, %s65
    %p77 = scmp.eq.s32.totalorder %s22, 3
    %p78 = por %p76, %p77
    %p80 = scmp.ne.s32.totalorder %s65, %s79
    %p81 = scmp.eq.s32.totalorder %s22, 0
    %p82 = por %p80, %p81
    %s84 = sadd.s32 %s83, 1
    %p87 = scmp.eq.s32.totalorder %s16, 3
    %p88 = scmp.ne.s32.totalorder %s83, %s85
    %p89 = scmp.eq.s32.totalorder %s16, 0
    %p90 = por %p88, %p89
    %p91 = scmp.ne.s32.totalorder %s83, %s85
    %p92 = scmp.eq.s32.totalorder %s21, 3
    %p93 = por %p91, %p92
    %p94 = scmp.ne.s32.totalorder %s85, %s86
    %p95 = scmp.eq.s32.totalorder %s21, 0
    %p96 = por %p94, %p95
    %p97 = scmp.ne.s32.totalorder %s85, %s86
    %p98 = scmp.eq.s32.totalorder %s22, 3
    %p99 = por %p97, %p98
    %p101 = scmp.ne.s32.totalorder %s86, %s100
    %p102 = scmp.eq.s32.totalorder %s22, 0
    %p103 = por %p101, %p102
    %s104 = ssub.s32 %s24, %s31
    %s105 = ssub.s32 %s23, %s35
    %s106 = sor.u32 %s104, %s105
    %p107 = scmp.eq.s32.totalorder %s106, 0
    %s109 = sadd.s32 %s108, 1
    %s110 = scalar_select %p107, %s108, %s109
    %p113 = pneg %p107
    %p114 = scmp.eq.s32.totalorder %s16, 3
    %p115 = por %p113, %p114
    %p116 = scmp.ne.s32.totalorder %s108, %s111
    %p117 = scmp.eq.s32.totalorder %s16, 0
    %p118 = por %p116, %p117
    %p119 = scmp.ne.s32.totalorder %s108, %s111
    %p120 = scmp.eq.s32.totalorder %s21, 3
    %p121 = por %p119, %p120
    %p122 = scmp.ne.s32.totalorder %s111, %s112
    %p123 = scmp.eq.s32.totalorder %s21, 0
    %p124 = por %p122, %p123
    %p125 = scmp.ne.s32.totalorder %s111, %s112
    %p126 = scmp.eq.s32.totalorder %s22, 3
    %p127 = por %p125, %p126
    %p129 = scmp.ne.s32.totalorder %s112, %s128
    %p130 = scmp.eq.s32.totalorder %s22, 0
    %p131 = por %p129, %p130
    %s132 = ssub.s32 %s24, %s31
    %p133 = scmp.eq.s32.totalorder %s132, 0
    %s135 = sadd.s32 %s134, 1
    %s136 = scalar_select %p133, %s134, %s135
    %p139 = pneg %p133
    %p140 = scmp.eq.s32.totalorder %s16, 3
    %p141 = por %p139, %p140
    %p142 = scmp.ne.s32.totalorder %s134, %s137
    %p143 = scmp.eq.s32.totalorder %s16, 0
    %p144 = por %p142, %p143
    %p145 = scmp.ne.s32.totalorder %s134, %s137
    %p146 = scmp.eq.s32.totalorder %s21, 3
    %p147 = por %p145, %p146
    %p148 = scmp.ne.s32.totalorder %s137, %s138
    %p149 = scmp.eq.s32.totalorder %s21, 0
    %p150 = por %p148, %p149
    %p151 = scmp.ne.s32.totalorder %s137, %s138
    %p152 = scmp.eq.s32.totalorder %s22, 3
    %p153 = por %p151, %p152
    %p155 = scmp.ne.s32.totalorder %s138, %s154
    %p156 = scmp.eq.s32.totalorder %s22, 0
    %p157 = por %p155, %p156
    %s158 = ssub.s32 %s24, %s31
    %p159 = scmp.eq.s32.totalorder %s158, 0
    %s161 = sadd.s32 %s160, 1
    %s162 = scalar_select %p159, %s160, %s161
    %p165 = pneg %p159
    %p166 = scmp.eq.s32.totalorder %s16, 3
    %p167 = por %p165, %p166
    %p168 = scmp.ne.s32.totalorder %s160, %s163
    %p169 = scmp.eq.s32.totalorder %s16, 0
    %p170 = por %p168, %p169
    %p171 = scmp.ne.s32.totalorder %s160, %s163
    %p172 = scmp.eq.s32.totalorder %s21, 3
    %p173 = por %p171, %p172
    %p174 = scmp.ne.s32.totalorder %s163, %s164
    %p175 = scmp.eq.s32.totalorder %s21, 0
    %p176 = por %p174, %p175
    %p177 = scmp.ne.s32.totalorder %s163, %s164
    %p178 = scmp.eq.s32.totalorder %s22, 3
    %p179 = por %p177, %p178
    %p181 = scmp.ne.s32.totalorder %s164, %s180
    %p182 = scmp.eq.s32.totalorder %s22, 0
    %p183 = por %p181, %p182
    %s184 = ssub.s32 %s24, %s31
    %p185 = scmp.eq.s32.totalorder %s184, 0
    %s187 = sadd.s32 %s186, 1
    %s188 = scalar_select %p185, %s186, %s187
    %p191 = pneg %p185
    %p192 = scmp.eq.s32.totalorder %s16, 3
    %p193 = por %p191, %p192
    %p194 = scmp.ne.s32.totalorder %s186, %s189
    %p195 = scmp.eq.s32.totalorder %s16, 0
    %p196 = por %p194, %p195
    %p197 = scmp.ne.s32.totalorder %s186, %s189
    %p198 = scmp.eq.s32.totalorder %s21, 3
    %p199 = por %p197, %p198
    %p200 = scmp.ne.s32.totalorder %s189, %s190
    %p201 = scmp.eq.s32.totalorder %s21, 0
    %p202 = por %p200, %p201
    %p203 = scmp.ne.s32.totalorder %s189, %s190
    %p204 = scmp.eq.s32.totalorder %s22, 3
    %p205 = por %p203, %p204
    %p207 = scmp.ne.s32.totalorder %s190, %s206
    %p208 = scmp.eq.s32.totalorder %s22, 0
    %p209 = por %p207, %p208
    %s210 = ssub.s32 %s24, %s31
    %p211 = scmp.eq.s32.totalorder %s210, 0
    %s213 = sadd.s32 %s212, 1
    %s214 = scalar_select %p211, %s212, %s213
    %p217 = pneg %p211
    %p218 = scmp.eq.s32.totalorder %s16, 3
    %p219 = por %p217, %p218
    %p220 = scmp.ne.s32.totalorder %s212, %s215
    %p221 = scmp.eq.s32.totalorder %s16, 0
    %p222 = por %p220, %p221
    %p223 = scmp.ne.s32.totalorder %s212, %s215
    %p224 = scmp.eq.s32.totalorder %s21, 3
    %p225 = por %p223, %p224
    %p226 = scmp.ne.s32.totalorder %s215, %s216
    %p227 = scmp.eq.s32.totalorder %s21, 0
    %p228 = por %p226, %p227
    %p229 = scmp.ne.s32.totalorder %s215, %s216
    %p230 = scmp.eq.s32.totalorder %s22, 3
    %p231 = por %p229, %p230
    %p233 = scmp.ne.s32.totalorder %s216, %s232
    %p234 = scmp.eq.s32.totalorder %s22, 0
    %p235 = por %p233, %p234
    %s236 = ssub.s32 %s24, %s31
    %p237 = scmp.eq.s32.totalorder %s236, 0
    %s239 = sadd.s32 %s238, 1
    %s240 = scalar_select %p237, %s238, %s239
    %p243 = pneg %p237
    %p244 = scmp.eq.s32.totalorder %s16, 3
    %p245 = por %p243, %p244
    %p246 = scmp.ne.s32.totalorder %s238, %s241
    %p247 = scmp.eq.s32.totalorder %s16, 0
    %p248 = por %p246, %p247
    %p249 = scmp.ne.s32.totalorder %s238, %s241
    %p250 = scmp.eq.s32.totalorder %s21, 3
    %p251 = por %p249, %p250
    %p252 = scmp.ne.s32.totalorder %s241, %s242
    %p253 = scmp.eq.s32.totalorder %s21, 0
    %p254 = por %p252, %p253
    %p255 = scmp.ne.s32.totalorder %s241, %s242
    %p256 = scmp.eq.s32.totalorder %s22, 3
    %p257 = por %p255, %p256
    %p259 = scmp.ne.s32.totalorder %s242, %s258
    %p260 = scmp.eq.s32.totalorder %s22, 0
    %p261 = por %p259, %p260
    %s262 = ssub.s32 %s24, %s31
    %p263 = scmp.eq.s32.totalorder %s262, 0
    %s265 = sadd.s32 %s264, 1
    %s266 = scalar_select %p263, %s264, %s265
    %p269 = pneg %p263
    %p270 = scmp.eq.s32.totalorder %s16, 3
    %p271 = por %p269, %p270
    %p272 = scmp.ne.s32.totalorder %s264, %s267
    %p273 = scmp.eq.s32.totalorder %s16, 0
    %p274 = por %p272, %p273
    %p275 = scmp.ne.s32.totalorder %s264, %s267
    %p276 = scmp.eq.s32.totalorder %s21, 3
    %p277 = por %p275, %p276
    %p278 = scmp.ne.s32.totalorder %s267, %s268
    %p279 = scmp.eq.s32.totalorder %s21, 0
    %p280 = por %p278, %p279
    %p281 = scmp.ne.s32.totalorder %s267, %s268
    %p282 = scmp.eq.s32.totalorder %s22, 3
    %p283 = por %p281, %p282
    %p285 = scmp.ne.s32.totalorder %s268, %s284
    %p286 = scmp.eq.s32.totalorder %s22, 0
    %p287 = por %p285, %p286
    %s288 = ssub.s32 %s23, %s35
    %p289 = scmp.eq.s32.totalorder %s288, 0
    %s291 = sadd.s32 %s290, 1
    %s292 = scalar_select %p289, %s290, %s291
    %p295 = pneg %p289
    %p296 = scmp.eq.s32.totalorder %s16, 3
    %p297 = por %p295, %p296
    %p298 = scmp.ne.s32.totalorder %s290, %s293
    %p299 = scmp.eq.s32.totalorder %s16, 0
    %p300 = por %p298, %p299
    %p301 = scmp.ne.s32.totalorder %s290, %s293
    %p302 = scmp.eq.s32.totalorder %s21, 3
    %p303 = por %p301, %p302
    %p304 = scmp.ne.s32.totalorder %s293, %s294
    %p305 = scmp.eq.s32.totalorder %s21, 0
    %p306 = por %p304, %p305
    %p307 = scmp.ne.s32.totalorder %s293, %s294
    %p308 = scmp.eq.s32.totalorder %s22, 3
    %p309 = por %p307, %p308
    %p311 = scmp.ne.s32.totalorder %s294, %s310
    %p312 = scmp.eq.s32.totalorder %s22, 0
    %p313 = por %p311, %p312
    %p314 = scmp.le.s32.totalorder 1, %s16
    %p315 = scmp.lt.s32.totalorder %s16, 5
    %p316 = pnand %p314, %p315
    %p317 = pneg %p316
    // Predicated region
    $region9: #{vision_llama_forward.1} parent=5 // pred_check
      _
    $region10: #{vision_llama_forward.1} parent=5 // pred_check_branch
      %319 = sbr.rel (%p316) target = $region12
    $region11: #{vision_llama_forward.1} parent=5 // pred_region
      %s320 = ssub.s32 %s16, 1
      // Predicated region
      $region13: #{vision_llama_forward.1} parent=11 // pred_check
        %p321 = pneg %p75
      $region14: #{vision_llama_forward.1} parent=11 // pred_check_branch
        %323 = sbr.rel (%p321) target = $region16
      $region15: #{vision_llama_forward.1} parent=11 // pred_region
        _
      $region16: #{vision_llama_forward.1} parent=11 // pred_fallthru
        _
      // Predicated region
      $region17: #{vision_llama_forward.1} parent=11 // pred_check
        %p324 = pneg %p96
      $region18: #{vision_llama_forward.1} parent=11 // pred_check_branch
        %326 = sbr.rel (%p324) target = $region20
      $region19: #{vision_llama_forward.1} parent=11 // pred_region
        _
      $region20: #{vision_llama_forward.1} parent=11 // pred_fallthru
        _
    $region12: #{vision_llama_forward.1} parent=5 // pred_fallthru
      _
    %p327 = scmp.lt.s32.totalorder %s16, 4
    // Predicated region
    $region21: #{vision_llama_forward.1} parent=5 // pred_check
      %p328 = pneg %p327
    $region22: #{vision_llama_forward.1} parent=5 // pred_check_branch
      %330 = sbr.rel (%p328) target = $region24
    $region23: #{vision_llama_forward.1} parent=5 // pred_region
      // Predicated region
      $region25: #{vision_llama_forward.1} parent=23 // pred_check
        %p331 = pneg %p48
      $region26: #{vision_llama_forward.1} parent=23 // pred_check_branch
        %333 = sbr.rel (%p331) target = $region28
      $region27: #{vision_llama_forward.1} parent=23 // pred_region
        %s334 = smul.u32 2, %s23
        %p335 = scmp.lt.s32.totalorder %s334, 3
        %s336 = scalar_select %p335, %s334, 3
        %s337 = smul.addr %s336, 8
        %s338 = scalar_lea.vmem %s0, %s337
        %s339 = smul.u32 2, %s23
      $region28: #{vision_llama_forward.1} parent=23 // pred_fallthru
        _
      // Predicated region
      $region29: #{vision_llama_forward.1} parent=23 // pred_check
        %p340 = pneg %p118
      $region30: #{vision_llama_forward.1} parent=23 // pred_check_branch
        %342 = sbr.rel (%p340) target = $region32
      $region31: #{vision_llama_forward.1} parent=23 // pred_region
        %s343 = smul.u32 2, %s23
        %p344 = scmp.lt.s32.totalorder %s24, 1
        %s345 = scalar_select %p344, %s24, 1
        %p346 = scmp.lt.s32.totalorder %s343, 3
        %s347 = scalar_select %p346, %s343, 3
        %s348 = smul.addr %s345, 4
        %s349 = sadd.s32 %s347, %s348
        %s350 = smul.addr %s349, 8
        %s351 = scalar_lea.vmem %s3, %s350
        %s352 = smul.u32 2, %s23
      $region32: #{vision_llama_forward.1} parent=23 // pred_fallthru
        _
      // Predicated region
      $region33: #{vision_llama_forward.1} parent=23 // pred_check
        %p353 = pneg %p144
      $region34: #{vision_llama_forward.1} parent=23 // pred_check_branch
        %355 = sbr.rel (%p353) target = $region36
      $region35: #{vision_llama_forward.1} parent=23 // pred_region
        %p356 = scmp.lt.s32.totalorder %s24, 1
        %s357 = scalar_select %p356, %s24, 1
        %s358 = scalar_lea.vmem %s4, %s357
      $region36: #{vision_llama_forward.1} parent=23 // pred_fallthru
        _
      // Predicated region
      $region37: #{vision_llama_forward.1} parent=23 // pred_check
        %p359 = pneg %p170
      $region38: #{vision_llama_forward.1} parent=23 // pred_check_branch
        %361 = sbr.rel (%p359) target = $region40
      $region39: #{vision_llama_forward.1} parent=23 // pred_region
        %p362 = scmp.lt.s32.totalorder %s24, 1
        %s363 = scalar_select %p362, %s24, 1
        %s364 = scalar_lea.vmem %s5, %s363
      $region40: #{vision_llama_forward.1} parent=23 // pred_fallthru
        _
      // Predicated region
      $region41: #{vision_llama_forward.1} parent=23 // pred_check
        %p365 = pneg %p196
      $region42: #{vision_llama_forward.1} parent=23 // pred_check_branch
        %367 = sbr.rel (%p365) target = $region44
      $region43: #{vision_llama_forward.1} parent=23 // pred_region
        %p368 = scmp.lt.s32.totalorder %s24, 1
        %s369 = scalar_select %p368, %s24, 1
        %s370 = smul.addr %s369, 8
        %s371 = smul.addr %s370, 8
        %s372 = scalar_lea.vmem %s6, %s371
      $region44: #{vision_llama_forward.1} parent=23 // pred_fallthru
        _
      // Predicated region
      $region45: #{vision_llama_forward.1} parent=23 // pred_check
        %p373 = pneg %p222
      $region46: #{vision_llama_forward.1} parent=23 // pred_check_branch
        %375 = sbr.rel (%p373) target = $region48
      $region47: #{vision_llama_forward.1} parent=23 // pred_region
        %p376 = scmp.lt.s32.totalorder %s24, 1
        %s377 = scalar_select %p376, %s24, 1
        %s378 = smul.addr %s377, 2
        %s379 = scalar_lea.vmem %s7, %s378
      $region48: #{vision_llama_forward.1} parent=23 // pred_fallthru
        _
      // Predicated region
      $region49: #{vision_llama_forward.1} parent=23 // pred_check
        %p380 = pneg %p248
      $region50: #{vision_llama_forward.1} parent=23 // pred_check_branch
        %382 = sbr.rel (%p380) target = $region52
      $region51: #{vision_llama_forward.1} parent=23 // pred_region
        %p383 = scmp.lt.s32.totalorder %s24, 1
        %s384 = scalar_select %p383, %s24, 1
        %s385 = smul.addr %s384, 16
        %s386 = smul.addr %s385, 8
        %s387 = scalar_lea.vmem %s8, %s386
      $region52: #{vision_llama_forward.1} parent=23 // pred_fallthru
        _
      // Predicated region
      $region53: #{vision_llama_forward.1} parent=23 // pred_check
        %p388 = pneg %p274
      $region54: #{vision_llama_forward.1} parent=23 // pred_check_branch
        %390 = sbr.rel (%p388) target = $region56
      $region55: #{vision_llama_forward.1} parent=23 // pred_region
        %p391 = scmp.lt.s32.totalorder %s24, 1
        %s392 = scalar_select %p391, %s24, 1
        %s393 = scalar_lea.vmem %s9, %s392
      $region56: #{vision_llama_forward.1} parent=23 // pred_fallthru
        _
    $region24: #{vision_llama_forward.1} parent=5 // pred_fallthru
      _
    %p394 = scmp.le.s32.totalorder 1, %s16
    %p395 = scmp.lt.s32.totalorder %s16, 5
    %p396 = pnand %p394, %p395
    %p397 = pneg %p396
    // Predicated region
    $region57: #{vision_llama_forward.1} parent=5 // pred_check
      _
    $region58: #{vision_llama_forward.1} parent=5 // pred_check_branch
      %399 = sbr.rel (%p396) target = $region60
    $region59: #{vision_llama_forward.1} parent=5 // pred_region
      %s400 = ssub.s32 %s16, 1
      %s401 = smul.u32 2, %s25
      %p402 = scmp.lt.s32.totalorder %s401, 3
      %s403 = scalar_select %p402, %s401, 3
      %s404 = smul.addr %s403, 8
      %s405 = scalar_lea.vmem %s0, %s404
      %p406 = pneg %p54
      %p407 = pneg %p51
      %p408 = pneg %p75
      %p409 = pneg %p72
      %p410 = pneg %p96
      %p411 = pneg %p93
      %s412 = smul.u32 2, %s25
      %p413 = scmp.lt.s32.totalorder %s26, 1
      %s414 = scalar_select %p413, %s26, 1
      %p415 = scmp.lt.s32.totalorder %s412, 3
      %s416 = scalar_select %p415, %s412, 3
      %s417 = smul.addr %s414, 4
      %s418 = sadd.s32 %s416, %s417
      %s419 = smul.addr %s418, 8
      %s420 = scalar_lea.vmem %s3, %s419
      %p421 = pneg %p124
      %p422 = pneg %p121
      %p423 = scmp.lt.s32.totalorder %s26, 1
      %s424 = scalar_select %p423, %s26, 1
      %s425 = scalar_lea.vmem %s4, %s424
      %p426 = pneg %p150
      %p427 = pneg %p147
      %p428 = scmp.lt.s32.totalorder %s26, 1
      %s429 = scalar_select %p428, %s26, 1
      %s430 = scalar_lea.vmem %s5, %s429
      %p431 = pneg %p176
      %p432 = pneg %p173
      %p433 = scmp.lt.s32.totalorder %s26, 1
      %s434 = scalar_select %p433, %s26, 1
      %s435 = smul.addr %s434, 8
      %s436 = smul.addr %s435, 8
      %s437 = scalar_lea.vmem %s6, %s436
      %p438 = pneg %p202
      %p439 = pneg %p199
      %p440 = scmp.lt.s32.totalorder %s26, 1
      %s441 = scalar_select %p440, %s26, 1
      %s442 = smul.addr %s441, 2
      %s443 = scalar_lea.vmem %s7, %s442
      %p444 = pneg %p228
      %p445 = pneg %p225
      %p446 = scmp.lt.s32.totalorder %s26, 1
      %s447 = scalar_select %p446, %s26, 1
      %s448 = smul.addr %s447, 16
      %s449 = smul.addr %s448, 8
      %s450 = scalar_lea.vmem %s8, %s449
      %p451 = pneg %p254
      %p452 = pneg %p251
      %p453 = scmp.lt.s32.totalorder %s26, 1
      %s454 = scalar_select %p453, %s26, 1
      %s455 = scalar_lea.vmem %s9, %s454
      %p456 = pneg %p280
      %p457 = pneg %p277
      %p458 = pneg %p306
      %p459 = pneg %p303
      %s460 = smul.u32 2, %s25
      %p461 = scmp.lt.s32.totalorder %s460, 3
      %s462 = scalar_select %p461, %s460, 3
      %s463 = smul.addr %s462, 8
      %s464 = scalar_lea.vmem %s10, %s463
      %s465 = smul.u32 2, %s25
      %p466 = scmp.lt.s32.totalorder %s465, 3
      %s467 = scalar_select %p466, %s465, 3
      %s468 = smul.addr %s467, 8
      %s469 = scalar_lea.vmem %s0, %s468
      %s470 = smul.u32 2, %s25
      %s471 = smul.u32 2, %s25
      %p472 = scmp.lt.s32.totalorder %s26, 1
      %s473 = scalar_select %p472, %s26, 1
      %p474 = scmp.lt.s32.totalorder %s471, 3
      %s475 = scalar_select %p474, %s471, 3
      %s476 = smul.addr %s473, 4
      %s477 = sadd.s32 %s475, %s476
      %s478 = smul.addr %s477, 8
      %s479 = scalar_lea.vmem %s3, %s478
      %s480 = smul.u32 2, %s25
      %p481 = scmp.lt.s32.totalorder %s26, 1
      %s482 = scalar_select %p481, %s26, 1
      %s483 = scalar_lea.vmem %s4, %s482
      %p484 = scmp.lt.s32.totalorder %s26, 1
      %s485 = scalar_select %p484, %s26, 1
      %s486 = scalar_lea.vmem %s5, %s485
      %p487 = scmp.lt.s32.totalorder %s26, 1
      %s488 = scalar_select %p487, %s26, 1
      %s489 = smul.addr %s488, 8
      %s490 = smul.addr %s489, 8
      %s491 = scalar_lea.vmem %s6, %s490
      %p492 = scmp.lt.s32.totalorder %s26, 1
      %s493 = scalar_select %p492, %s26, 1
      %s494 = smul.addr %s493, 2
      %s495 = scalar_lea.vmem %s7, %s494
      %p496 = scmp.lt.s32.totalorder %s26, 1
      %s497 = scalar_select %p496, %s26, 1
      %s498 = smul.addr %s497, 16
      %s499 = smul.addr %s498, 8
      %s500 = scalar_lea.vmem %s8, %s499
      %p501 = scmp.lt.s32.totalorder %s26, 1
      %s502 = scalar_select %p501, %s26, 1
      %s503 = scalar_lea.vmem %s9, %s502
      %s504 = smul.u32 2, %s25
      %p505 = scmp.lt.s32.totalorder %s504, 3
      %s506 = scalar_select %p505, %s504, 3
      %s507 = smul.addr %s506, 8
      %s508 = scalar_lea.vmem %s10, %s507
      %s509 = smul.u32 2, %s25
      %p510 = scmp.eq.s32.totalorder %s26, 0
      // Predicated region
      $region61: #{vision_llama_forward.1} parent=59 // pred_check
        %p511 = pneg %p510
      $region62: #{vision_llama_forward.1} parent=59 // pred_check_branch
        %513 = sbr.rel (%p511) target = $region64
      $region63: #{vision_llama_forward.1} parent=59 // pred_region
        %v514 = vld [vmem:[%s469] sm:$0xff]
        %v515 = vld [vmem:[%s469 + $0x8] sm:$0xff]
        %v516 = vld [vmem:[%s1] sm:$0xff]
        %v517 = vld [vmem:[%s1 + $0x8] sm:$0xff]
        %v518 = vld [vmem:[%s1 + $0x10] sm:$0xff]
        %v519 = vld [vmem:[%s1 + $0x18] sm:$0xff]
        %v520 = vld [vmem:[%s1 + $0x20] sm:$0xff]
        %v521 = vld [vmem:[%s1 + $0x28] sm:$0xff]
        %v522 = vld [vmem:[%s1 + $0x30] sm:$0xff]
        %v523 = vld [vmem:[%s1 + $0x38] sm:$0xff]
        %v524 = vld [vmem:[%s2] sm:$0x1]
        %v526 = vperm.slane %v524, 0
        %vm528 = vcmask 523264
        %v530 = vsel %vm528, %v514, 0
        %v533 = vsel %vm528, %v515, 0
        %535 = vmatpush.msra.mxu0 0.0
        %536 = vmatpush.msra.mxu0 0.0
        %537 = vmatpush.msra.mxu0 0.0
        %538 = vmatpush.msra.mxu0 0.0
        %539 = vmatpush.msra.mxu0 0.0
        %540 = vmatpush.msra.mxu0 0.0
        %541 = vmatpush.msra.mxu0 0.0
        %542 = vmatpush.msra.mxu0 0.0
        %543 = vmatpush.msra.mxu0 %v523
        %544 = vmatpush.msra.mxu0 %v522
        %545 = vmatpush.msra.mxu0 %v521
        %546 = vmatpush.msra.mxu0 %v520
        %547 = vmatpush.msra.mxu0 %v519
        %548 = vmatpush.msra.mxu0 %v518
        %549 = vmatpush.msra.mxu0 %v517
        %550 = vmatpush.msra.mxu0 %v516
        %551 = vmatmul.f32.gmra.mxu0 %v530
        %v552 = vpop.f32.mrf.mxu0
        %v553 = vadd.f32 %v526, %v552
        %554 = vmatmul.f32.gmra.mxu0 %v533
        %v555 = vpop.f32.mrf.mxu0
        %v556 = vadd.f32 %v526, %v555
        %557 = vdwg.mxu0
        %vm558 = vcmask 261120
        %559 = vst.msk [vmem:[%s508] sm:$0xff] %vm558, %v553
        %560 = vst.msk [vmem:[%s508 + $0x8] sm:$0xff] %vm558, %v556
      $region64: #{vision_llama_forward.1} parent=59 // pred_fallthru
        _
      %v561 = vld [vmem:[%s508] sm:$0xff]
      %v562 = vld [vmem:[%s508 + $0x8] sm:$0xff]
      %v563 = vld [vmem:[%s479] sm:$0xff]
      %v564 = vld [vmem:[%s479 + $0x8] sm:$0xff]
      %v565 = vadd.f32 %v561, %v563
      %v566 = vadd.f32 %v562, %v564
      %v567 = vld [vmem:[%s483] sm:$0x1]
      %v568 = vld [vmem:[%s486] sm:$0x1]
      %vm569 = vcmask 261120
      %v570 = vsel %vm569, %v565, 0.0
      %571 = vadd.xlane.f32.xlu0 %v570
      %v572 = vpop.xlane.xlu0 %571
      %v573 = vsel %vm569, %v566, 0.0
      %574 = vadd.xlane.f32.xlu0 %v573
      %v575 = vpop.xlane.xlu0 %574
      %v576 = vrcp.pop 32.0
      %v577 = vmul.f32 32.0, %v576
      %v578 = vsub.f32 1.0, %v577
      %v579 = vmul.f32 %v576, %v578
      %v580 = vadd.f32 %v576, %v579
      %vm581 = vweird.f32 %v576
      %v582 = vsel %vm581, %v576, %v580
      %v583 = vmul.f32 %v572, %v582
      %v584 = vmul.f32 %v575, %v582
      %v585 = vsub.f32 %v565, %v583
      %v586 = vsub.f32 %v566, %v584
      %v587 = vmul.f32 %v585, %v585
      %v588 = vmul.f32 %v586, %v586
      %v589 = vsel %vm569, %v587, 0.0
      %590 = vadd.xlane.f32.xlu0 %v589
      %v591 = vpop.xlane.xlu0 %590
      %v592 = vsel %vm569, %v588, 0.0
      %593 = vadd.xlane.f32.xlu0 %v592
      %v594 = vpop.xlane.xlu0 %593
      %v595 = vmul.f32 %v591, %v582
      %v596 = vmul.f32 %v594, %v582
      %v597 = vadd.f32 %v595, 1e-05
      %v598 = vadd.f32 %v596, 1e-05
      %v599 = vrsqrt.pop %v597
      %v600 = vmul.f32 %v599, %v597
      %v601 = vmul.f32 %v600, %v599
      %v602 = vmul.f32 0.5, %v601
      %v603 = vsub.f32 1.5, %v602
      %v604 = vmul.f32 %v599, %v603
      %vm605 = vweird.f32 %v597
      %vm606 = vweird.f32 %v599
      %vm607 = vmor %vm605, %vm606
      %v608 = vsel %vm607, %v599, %v604
      %v609 = vrsqrt.pop %v598
      %v610 = vmul.f32 %v609, %v598
      %v611 = vmul.f32 %v610, %v609
      %v612 = vmul.f32 0.5, %v611
      %v613 = vsub.f32 1.5, %v612
      %v614 = vmul.f32 %v609, %v613
      %vm615 = vweird.f32 %v598
      %vm616 = vweird.f32 %v609
      %vm617 = vmor %vm615, %vm616
      %v618 = vsel %vm617, %v609, %v614
      %v619 = vmul.f32 %v585, %v608
      %v620 = vmul.f32 %v586, %v618
      %v622 = vperm.slane %v567, 0
      %v624 = vmul.f32 %v619, %v622
      %v625 = vmul.f32 %v620, %v622
      %v627 = vperm.slane %v568, 0
      %v629 = vadd.f32 %v624, %v627
      %v630 = vadd.f32 %v625, %v627
      %v631 = vld [vmem:[%s491] sm:$0xff]
      %v632 = vld [vmem:[%s491 + $0x8] sm:$0xff]
      %v633 = vld [vmem:[%s491 + $0x10] sm:$0xff]
      %v634 = vld [vmem:[%s491 + $0x18] sm:$0xff]
      %v635 = vld [vmem:[%s491 + $0x20] sm:$0xff]
      %v636 = vld [vmem:[%s491 + $0x28] sm:$0xff]
      %v637 = vld [vmem:[%s491 + $0x30] sm:$0xff]
      %v638 = vld [vmem:[%s491 + $0x38] sm:$0xff]
      %v639 = vld [vmem:[%s495] sm:$0x3]
      %v641 = vperm.slane %v639, 0
      %v642 = vperm.slane %v639, 1
      %v646 = vsel %vm569, %v629, 0
      %v649 = vsel %vm569, %v630, 0
      %651 = vmatpush.msra.mxu0 0.0
      %652 = vmatpush.msra.mxu0 0.0
      %653 = vmatpush.msra.mxu0 0.0
      %654 = vmatpush.msra.mxu0 0.0
      %655 = vmatpush.msra.mxu0 0.0
      %656 = vmatpush.msra.mxu0 0.0
      %657 = vmatpush.msra.mxu0 0.0
      %658 = vmatpush.msra.mxu0 0.0
      %659 = vmatpush.msra.mxu0 0.0
      %660 = vmatpush.msra.mxu0 0.0
      %661 = vmatpush.msra.mxu0 0.0
      %662 = vmatpush.msra.mxu0 0.0
      %663 = vmatpush.msra.mxu0 %v637
      %664 = vmatpush.msra.mxu0 %v635
      %665 = vmatpush.msra.mxu0 %v633
      %666 = vmatpush.msra.mxu0 %v631
      %667 = vmatmul.f32.gmra.mxu0 %v646
      %v668 = vpop.f32.mrf.mxu0
      %v669 = vadd.f32 %v641, %v668
      %670 = vmatmul.f32.gmra.mxu0 %v649
      %v671 = vpop.f32.mrf.mxu0
      %v672 = vadd.f32 %v641, %v671
      %673 = vdwg.mxu0
      %674 = vmatpush.msra.mxu0 0.0
      %675 = vmatpush.msra.mxu0 0.0
      %676 = vmatpush.msra.mxu0 0.0
      %677 = vmatpush.msra.mxu0 0.0
      %678 = vmatpush.msra.mxu0 0.0
      %679 = vmatpush.msra.mxu0 0.0
      %680 = vmatpush.msra.mxu0 0.0
      %681 = vmatpush.msra.mxu0 0.0
      %682 = vmatpush.msra.mxu0 0.0
      %683 = vmatpush.msra.mxu0 0.0
      %684 = vmatpush.msra.mxu0 0.0
      %685 = vmatpush.msra.mxu0 0.0
      %686 = vmatpush.msra.mxu0 %v638
      %687 = vmatpush.msra.mxu0 %v636
      %688 = vmatpush.msra.mxu0 %v634
      %689 = vmatpush.msra.mxu0 %v632
      %690 = vmatmul.f32.gmra.mxu0 %v646
      %v691 = vpop.f32.mrf.mxu0
      %v692 = vadd.f32 %v642, %v691
      %693 = vmatmul.f32.gmra.mxu0 %v649
      %v694 = vpop.f32.mrf.mxu0
      %v695 = vadd.f32 %v642, %v694
      %696 = vdwg.mxu0
      %v697 = vxor.u32 %v669, 2147483648
      %v698 = vxor.u32 %v672, 2147483648
      %v699 = vmul.f32 %v697, 1.442695
      %v700 = vpow.pop %v699
      %v701 = vmul.f32 %v698, 1.442695
      %v702 = vpow.pop %v701
      %v703 = vadd.f32 %v700, 1.0
      %v704 = vadd.f32 %v702, 1.0
      %v705 = vrcp.pop %v703
      %v706 = vmul.f32 %v703, %v705
      %v707 = vsub.f32 1.0, %v706
      %v708 = vmul.f32 %v705, %v707
      %v709 = vadd.f32 %v705, %v708
      %vm710 = vweird.f32 %v703
      %vm711 = vweird.f32 %v705
      %vm712 = vmor %vm710, %vm711
      %v713 = vsel %vm712, %v705, %v709
      %v714 = vand.u32 2147483647, %v703
      %vm715 = vcmp.eq.f32.partialorder %v714, 8.507059e+37
      %v716 = vand.u32 %v703, 2147483648
      %v717 = vor.u32 1.1754944e-38, %v716
      %v718 = vsel %vm715, %v717, %v713
      %v719 = vmul.f32 1.0, %v718
      %v720 = vrcp.pop %v704
      %v721 = vmul.f32 %v704, %v720
      %v722 = vsub.f32 1.0, %v721
      %v723 = vmul.f32 %v720, %v722
      %v724 = vadd.f32 %v720, %v723
      %vm725 = vweird.f32 %v704
      %vm726 = vweird.f32 %v720
      %vm727 = vmor %vm725, %vm726
      %v728 = vsel %vm727, %v720, %v724
      %v729 = vand.u32 2147483647, %v704
      %vm730 = vcmp.eq.f32.partialorder %v729, 8.507059e+37
      %v731 = vand.u32 %v704, 2147483648
      %v732 = vor.u32 1.1754944e-38, %v731
      %v733 = vsel %vm730, %v732, %v728
      %v734 = vmul.f32 1.0, %v733
      %v735 = vmul.f32 %v669, %v719
      %v736 = vmul.f32 %v672, %v734
      %v737 = vmul.f32 %v735, %v692
      %v738 = vmul.f32 %v736, %v695
      %v739 = vld [vmem:[%s500] sm:$0xff]
      %v740 = vld [vmem:[%s500 + $0x8] sm:$0xff]
      %v741 = vld [vmem:[%s500 + $0x10] sm:$0xff]
      %v742 = vld [vmem:[%s500 + $0x18] sm:$0xff]
      %v743 = vld [vmem:[%s500 + $0x20] sm:$0xff]
      %v744 = vld [vmem:[%s500 + $0x28] sm:$0xff]
      %v745 = vld [vmem:[%s500 + $0x30] sm:$0xff]
      %v746 = vld [vmem:[%s500 + $0x38] sm:$0xff]
      %v747 = vld [vmem:[%s500 + $0x40] sm:$0xff]
      %v748 = vld [vmem:[%s500 + $0x48] sm:$0xff]
      %v749 = vld [vmem:[%s500 + $0x50] sm:$0xff]
      %v750 = vld [vmem:[%s500 + $0x58] sm:$0xff]
      %v751 = vld [vmem:[%s500 + $0x60] sm:$0xff]
      %v752 = vld [vmem:[%s500 + $0x68] sm:$0xff]
      %v753 = vld [vmem:[%s500 + $0x70] sm:$0xff]
      %v754 = vld [vmem:[%s500 + $0x78] sm:$0xff]
      %v755 = vld [vmem:[%s503] sm:$0x1]
      %v757 = vperm.slane %v755, 0
      %759 = vmatpush.msra.mxu0 %v754
      %760 = vmatpush.msra.mxu0 %v753
      %761 = vmatpush.msra.mxu0 %v752
      %762 = vmatpush.msra.mxu0 %v751
      %763 = vmatpush.msra.mxu0 %v750
      %764 = vmatpush.msra.mxu0 %v749
      %765 = vmatpush.msra.mxu0 %v748
      %766 = vmatpush.msra.mxu0 %v747
      %767 = vmatpush.msra.mxu0 %v746
      %768 = vmatpush.msra.mxu0 %v745
      %769 = vmatpush.msra.mxu0 %v744
      %770 = vmatpush.msra.mxu0 %v743
      %771 = vmatpush.msra.mxu0 %v742
      %772 = vmatpush.msra.mxu0 %v741
      %773 = vmatpush.msra.mxu0 %v740
      %774 = vmatpush.msra.mxu0 %v739
      %775 = vmatmul.f32.gmra.mxu0 %v737
      %v776 = vpop.f32.mrf.mxu0
      %v777 = vadd.f32 %v757, %v776
      %778 = vmatmul.f32.gmra.mxu0 %v738
      %v779 = vpop.f32.mrf.mxu0
      %v780 = vadd.f32 %v757, %v779
      %781 = vdwg.mxu0
      %v782 = vadd.f32 %v777, %v565
      %v783 = vadd.f32 %v780, %v566
      %784 = vst.msk [vmem:[%s508] sm:$0xff] %vm569, %v782
      %785 = vst.msk [vmem:[%s508 + $0x8] sm:$0xff] %vm569, %v783
      %s786 = smul.u32 2, %s25
      %p787 = scmp.lt.s32.totalorder %s786, 3
      %s788 = scalar_select %p787, %s786, 3
      %s789 = smul.addr %s788, 8
      %s790 = scalar_lea.vmem %s10, %s789
      // Predicated region
      $region65: #{vision_llama_forward.1} parent=59 // pred_check
        %p791 = pneg %p303
      $region66: #{vision_llama_forward.1} parent=59 // pred_check_branch
        %793 = sbr.rel (%p791) target = $region68
      $region67: #{vision_llama_forward.1} parent=59 // pred_region
        %s794 = smul.u32 2, %s25
      $region68: #{vision_llama_forward.1} parent=59 // pred_fallthru
        _
    $region60: #{vision_llama_forward.1} parent=5 // pred_fallthru
      _
    %p795 = scmp.le.s32.totalorder 2, %s16
    // Predicated region
    $region69: #{vision_llama_forward.1} parent=5 // pred_check
      %p796 = pneg %p795
    $region70: #{vision_llama_forward.1} parent=5 // pred_check_branch
      %798 = sbr.rel (%p796) target = $region72
    $region71: #{vision_llama_forward.1} parent=5 // pred_region
      %s799 = ssub.s32 %s16, 2
      // Predicated region
      $region73: #{vision_llama_forward.1} parent=71 // pred_check
        %p800 = pneg %p309
      $region74: #{vision_llama_forward.1} parent=71 // pred_check_branch
        %802 = sbr.rel (%p800) target = $region76
      $region75: #{vision_llama_forward.1} parent=71 // pred_region
        %s803 = smul.u32 2, %s27
        %p804 = scmp.lt.s32.totalorder %s803, 3
        %s805 = scalar_select %p804, %s803, 3
        %s806 = smul.addr %s805, 8
        %s807 = scalar_lea.vmem %s10, %s806
      $region76: #{vision_llama_forward.1} parent=71 // pred_fallthru
        _
    $region72: #{vision_llama_forward.1} parent=5 // pred_fallthru
      _
  $region6: #{vision_llama_forward.1} parent=0 // loop_footer
    %s20 = sadd.s32 1, %s16
  $region7: #{vision_llama_forward.1} parent=0 // loop_footer_branch
    %15 = sbr.rel target = $region3
  $region8: #{vision_llama_forward.1} parent=0 // loop_exit
    _

</llo_original>
